<compile_context>
chip_gen: v6e
topology: v6e:2x2x1
jax: 0.10.0
libtpu: 0.0.40
codegen_flags: <defaults>
</compile_context>

<pallas_src>
import jax
import jax.numpy as jnp
from jax.experimental import pallas as pl
from jax.experimental.pallas import tpu as pltpu

# MXU operand dtype.  bf16-in / f32-accumulate is the fast portable MXU path
# on v5e/v6e/v7x.  Set to jnp.float32 for bit-closer parity with PyTorch.
_MXU_DTYPE = jnp.bfloat16

_LANE = 128          # TPU lane width
_OUT_LANES = 128     # lane width of the padded output slab
_BN_EPS = 1e-5


def mlp_ebm_kernel(x_ref, w1_ref, w2_ref, w3_ref, p_ref, o_ref):
    # Packed parameter slab (8, hid_pad), f32:
    #   row 0 = b1, row 1 = gamma, row 2 = beta, row 3 = b2,
    #   row 4 = b3 broadcast across lanes, rows 5-7 = unused (zeros).
    b1 = p_ref[0:1, :]
    gamma = p_ref[1:2, :]
    beta = p_ref[2:3, :]
    b2 = p_ref[3:4, :]
    b3 = p_ref[4:5, :_OUT_LANES]

    # ---- Linear(input_dim, hid) on the MXU (bf16 in, f32 accumulate) ----
    h = jnp.dot(x_ref[...], w1_ref[...],
                preferred_element_type=jnp.float32) + b1

    # ---- BatchNorm1d(hid), training-mode batch statistics (f32) ----
    # One sublane-reduce pass: sum + sum-of-squares.
    inv_b = jnp.float32(1.0 / h.shape[0])
    s = jnp.sum(h, axis=0, keepdims=True)
    ss = jnp.sum(h * h, axis=0, keepdims=True)
    mean = s * inv_b
    var = jnp.maximum(ss * inv_b - mean * mean, 0.0)     # biased batch var
    scale = gamma * jax.lax.rsqrt(var + _BN_EPS)          # EUP rsqrt
    h = (h - mean) * scale + beta

    # ---- ReLU ----
    h = jnp.maximum(h, 0.0)

    # ---- Linear(hid, hid) on the MXU ----
    h = jnp.dot(h.astype(_MXU_DTYPE), w2_ref[...],
                preferred_element_type=jnp.float32) + b2
    h = jnp.maximum(h, 0.0)

    # ---- Linear(hid, 1) folded into the MXU: w3 zero-padded to (hid, 128),
    #      result is already the lane-dense (B, 128) slab (lane 0 = logit). ----
    logit = jnp.dot(h.astype(_MXU_DTYPE), w3_ref[...],
                    preferred_element_type=jnp.float32) + b3

    # ---- Sigmoid with one EUP transcendental: sigmoid(z)=0.5*tanh(0.5*z)+0.5 ----
    o_ref[...] = (0.5 * jnp.tanh(0.5 * logit) + 0.5).astype(o_ref.dtype)


def _pad_last(a, to):
    pad = to - a.shape[-1]
    if pad == 0:
        return a
    return jnp.pad(a, [(0, 0)] * (a.ndim - 1) + [(0, pad)])


@jax.jit
def mlp_ebm_forward(x, params):
    """x: (B, input_dim) float32.  Returns (B, 1) float32 in [0, 1]."""
    B, input_dim = x.shape
    w1, b1, gamma, beta, w2, b2, w3, b3 = params
    hid = w1.shape[1]
    hid_pad = pl.cdiv(hid, _LANE) * _LANE

    # --- wrapper-side layout / dtype prep (XLA ops outside the kernel) ---
    # Zero-pad hid to a lane-dense multiple of 128; padded features have
    # b1 = gamma = beta = b2 = 0, so they stay exactly 0 through BN / ReLU /
    # layer 2 and the padded w3 rows contribute nothing to the logit.
    x_bf = x.astype(_MXU_DTYPE)
    w1_p = _pad_last(w1, hid_pad).astype(_MXU_DTYPE)                        # (in, hid_pad)
    w2_p = jnp.pad(w2, ((0, hid_pad - hid), (0, hid_pad - hid))).astype(_MXU_DTYPE)
    w3_p = jnp.pad(w3, ((0, hid_pad - hid), (0, _OUT_LANES - 1))).astype(_MXU_DTYPE)

    # Pack the six tiny per-feature parameters into one (8, hid_pad) slab:
    # a single VMEM tile / single prologue DMA instead of six padded tiles.
    p_slab = jnp.concatenate([
        _pad_last(b1, hid_pad),
        _pad_last(gamma, hid_pad),
        _pad_last(beta, hid_pad),
        _pad_last(b2, hid_pad),
        jnp.broadcast_to(b3.reshape(1, 1), (1, hid_pad)),
        jnp.zeros((3, hid_pad), jnp.float32),
    ], axis=0)

    def full_spec(shape):
        return pl.BlockSpec(shape, lambda: (0,) * len(shape))

    args = (x_bf, w1_p, w2_p, w3_p, p_slab)
    in_specs = [full_spec(a.shape) for a in args]

    flops = 2 * B * (input_dim * hid_pad + hid_pad * hid_pad + hid_pad * _OUT_LANES)
    bytes_accessed = int(2 * (x_bf.size + w1_p.size + w2_p.size + w3_p.size)
                         + 4 * (p_slab.size + B * _OUT_LANES))
    cost = pl.CostEstimate(flops=flops,
                           transcendentals=B * _OUT_LANES + hid_pad,
                           bytes_accessed=bytes_accessed)

    out_padded = pl.pallas_call(
        mlp_ebm_kernel,
        out_shape=jax.ShapeDtypeStruct((B, _OUT_LANES), jnp.float32),
        grid=(),  # whole problem resident in VMEM; BN stats need the full batch
        in_specs=in_specs,
        out_specs=full_spec((B, _OUT_LANES)),
        cost_estimate=cost,
        compiler_params=pltpu.CompilerParams(vmem_limit_bytes=32 * 1024 * 1024),
    )(*args)

    # (B, 128) lane-dense slab -> (B, 1), matching nn.Linear(hid, 1) output.
    return out_padded[:, :1]


def mlp_ebm_reference(x, params):
    """Pure-JAX f32 reference (PyTorch forward semantics)."""
    w1, b1, gamma, beta, w2, b2, w3, b3 = params
    h = x @ w1 + b1
    mean = jnp.mean(h, axis=0, keepdims=True)
    var = jnp.mean((h - mean) ** 2, axis=0, keepdims=True)
    h = (h - mean) / jnp.sqrt(var + _BN_EPS) * gamma + beta
    h = jnp.maximum(h, 0.0)
    h = jnp.maximum(h @ w2 + b2, 0.0)
    return jax.nn.sigmoid(h @ w3 + b3)


def init_params(key, input_dim, hid_dim):
    """Deterministic PyTorch-Linear-style (uniform +/- 1/sqrt(fan_in)) init."""
    ks = jax.random.split(key, 6)

    def linear_init(kw, kb, fan_in, fan_out):
        bound = 1.0 / jnp.sqrt(jnp.float32(fan_in))
        w = jax.random.uniform(kw, (fan_in, fan_out), jnp.float32, -bound, bound)
        b = jax.random.uniform(kb, (1, fan_out), jnp.float32, -bound, bound)
        return w, b

    w1, b1 = linear_init(ks[0], ks[1], input_dim, hid_dim)
    w2, b2 = linear_init(ks[2], ks[3], hid_dim, hid_dim)
    w3, b3 = linear_init(ks[4], ks[5], hid_dim, 1)
    gamma = jnp.ones((1, hid_dim), jnp.float32)   # BatchNorm1d weight init = 1
    beta = jnp.zeros((1, hid_dim), jnp.float32)   # BatchNorm1d bias   init = 0
    return (w1, b1, gamma, beta, w2, b2, w3, b3)


if __name__ == "__main__":
    batch = 8
    input_dim = 16
    hid_dim = 32

    key = jax.random.PRNGKey(0)
    k_x, k_p = jax.random.split(key)
    x = jax.random.normal(k_x, (batch, input_dim), dtype=jnp.float32)
    params = init_params(k_p, input_dim, hid_dim)

    out = mlp_ebm_forward(x, params)
    out = jax.block_until_ready(out)

    assert out.shape == (batch, 1)
    assert out.dtype == jnp.float32
    assert bool(jnp.all((out >= 0.0) & (out <= 1.0)))   # sigmoid range (exact with tanh form)

    ref = mlp_ebm_reference(x, params)
    # Tolerance covers bf16 MXU operands (f32 accumulate) vs PyTorch f32 matmuls.
    assert bool(jnp.allclose(out, ref, atol=2e-2)), (out, ref)

    print("KERNEL_OK")
</pallas_src>

<mosaic_0001>
module attributes {stable_mosaic.version = 11 : i64} {
  func.func @mlp_ebm_kernel(%arg0: memref<8x16xbf16, #tpu.memory_space<vmem>>, %arg1: memref<16x128xbf16, #tpu.memory_space<vmem>>, %arg2: memref<128x128xbf16, #tpu.memory_space<vmem>>, %arg3: memref<128x128xbf16, #tpu.memory_space<vmem>>, %arg4: memref<8x128xf32, #tpu.memory_space<vmem>>, %arg5: memref<8x128xf32, #tpu.memory_space<vmem>>) attributes {dimension_semantics = [], scalar_prefetch = 0 : i64, scratch_operands = 0 : i64, tpu.core_type = #tpu.core_type<tc>} {
    %c0 = arith.constant 0 : index
    %c0_0 = arith.constant 0 : index
    %0 = vector.load %arg4[%c0, %c0_0] : memref<8x128xf32, #tpu.memory_space<vmem>>, vector<1x128xf32>
    %c1 = arith.constant 1 : index
    %c0_1 = arith.constant 0 : index
    %1 = vector.load %arg4[%c1, %c0_1] : memref<8x128xf32, #tpu.memory_space<vmem>>, vector<1x128xf32>
    %c2 = arith.constant 2 : index
    %c0_2 = arith.constant 0 : index
    %2 = vector.load %arg4[%c2, %c0_2] : memref<8x128xf32, #tpu.memory_space<vmem>>, vector<1x128xf32>
    %c3 = arith.constant 3 : index
    %c0_3 = arith.constant 0 : index
    %3 = vector.load %arg4[%c3, %c0_3] : memref<8x128xf32, #tpu.memory_space<vmem>>, vector<1x128xf32>
    %c4 = arith.constant 4 : index
    %c0_4 = arith.constant 0 : index
    %4 = vector.load %arg4[%c4, %c0_4] : memref<8x128xf32, #tpu.memory_space<vmem>>, vector<1x128xf32>
    %c0_5 = arith.constant 0 : index
    %c0_6 = arith.constant 0 : index
    %5 = vector.load %arg0[%c0_5, %c0_6] : memref<8x16xbf16, #tpu.memory_space<vmem>>, vector<8x16xbf16>
    %c0_7 = arith.constant 0 : index
    %c0_8 = arith.constant 0 : index
    %6 = vector.load %arg1[%c0_7, %c0_8] : memref<16x128xbf16, #tpu.memory_space<vmem>>, vector<16x128xbf16>
    %cst = arith.constant dense<0.000000e+00> : vector<8x128xf32>
    %7 = tpu.matmul %5, %6, %cst {dimension_numbers = #tpu.dot_dimension_numbers<[1], [0], [0], [1], [0, 0, 1, 1], [], []>} : vector<8x16xbf16>, vector<16x128xbf16>, vector<8x128xf32> -> vector<8x128xf32>
    %8 = vector.broadcast %0 : vector<1x128xf32> to vector<8x128xf32>
    %9 = arith.addf %7, %8 : vector<8x128xf32>
    %cst_9 = arith.constant dense<0.000000e+00> : vector<128xf32>
    %10 = vector.multi_reduction <add>, %9, %cst_9 [0] : vector<8x128xf32> to vector<128xf32>
    %11 = vector.shape_cast %10 : vector<128xf32> to vector<1x128xf32>
    %12 = arith.mulf %9, %9 : vector<8x128xf32>
    %cst_10 = arith.constant dense<0.000000e+00> : vector<128xf32>
    %13 = vector.multi_reduction <add>, %12, %cst_10 [0] : vector<8x128xf32> to vector<128xf32>
    %14 = vector.shape_cast %13 : vector<128xf32> to vector<1x128xf32>
    %cst_11 = arith.constant 1.250000e-01 : f32
    %15 = vector.broadcast %cst_11 : f32 to vector<1x128xf32>
    %16 = arith.mulf %11, %15 : vector<1x128xf32>
    %cst_12 = arith.constant 1.250000e-01 : f32
    %17 = vector.broadcast %cst_12 : f32 to vector<1x128xf32>
    %18 = arith.mulf %14, %17 : vector<1x128xf32>
    %19 = arith.mulf %16, %16 : vector<1x128xf32>
    %20 = arith.subf %18, %19 : vector<1x128xf32>
    %cst_13 = arith.constant 0.000000e+00 : f32
    %21 = vector.broadcast %cst_13 : f32 to vector<1x128xf32>
    %22 = arith.maximumf %20, %21 : vector<1x128xf32>
    %cst_14 = arith.constant 9.99999974E-6 : f32
    %23 = vector.broadcast %cst_14 : f32 to vector<1x128xf32>
    %24 = arith.addf %22, %23 : vector<1x128xf32>
    %25 = math.rsqrt %24 : vector<1x128xf32>
    %26 = arith.mulf %1, %25 : vector<1x128xf32>
    %27 = vector.broadcast %16 : vector<1x128xf32> to vector<8x128xf32>
    %28 = arith.subf %9, %27 : vector<8x128xf32>
    %29 = vector.broadcast %26 : vector<1x128xf32> to vector<8x128xf32>
    %30 = arith.mulf %28, %29 : vector<8x128xf32>
    %31 = vector.broadcast %2 : vector<1x128xf32> to vector<8x128xf32>
    %32 = arith.addf %30, %31 : vector<8x128xf32>
    %cst_15 = arith.constant 0.000000e+00 : f32
    %33 = vector.broadcast %cst_15 : f32 to vector<8x128xf32>
    %34 = arith.maximumf %32, %33 : vector<8x128xf32>
    %35 = arith.truncf %34 : vector<8x128xf32> to vector<8x128xbf16>
    %c0_16 = arith.constant 0 : index
    %c0_17 = arith.constant 0 : index
    %36 = vector.load %arg2[%c0_16, %c0_17] : memref<128x128xbf16, #tpu.memory_space<vmem>>, vector<128x128xbf16>
    %cst_18 = arith.constant dense<0.000000e+00> : vector<8x128xf32>
    %37 = tpu.matmul %35, %36, %cst_18 {dimension_numbers = #tpu.dot_dimension_numbers<[1], [0], [0], [1], [0, 0, 1, 1], [], []>} : vector<8x128xbf16>, vector<128x128xbf16>, vector<8x128xf32> -> vector<8x128xf32>
    %38 = vector.broadcast %3 : vector<1x128xf32> to vector<8x128xf32>
    %39 = arith.addf %37, %38 : vector<8x128xf32>
    %cst_19 = arith.constant 0.000000e+00 : f32
    %40 = vector.broadcast %cst_19 : f32 to vector<8x128xf32>
    %41 = arith.maximumf %39, %40 : vector<8x128xf32>
    %42 = arith.truncf %41 : vector<8x128xf32> to vector<8x128xbf16>
    %c0_20 = arith.constant 0 : index
    %c0_21 = arith.constant 0 : index
    %43 = vector.load %arg3[%c0_20, %c0_21] : memref<128x128xbf16, #tpu.memory_space<vmem>>, vector<128x128xbf16>
    %cst_22 = arith.constant dense<0.000000e+00> : vector<8x128xf32>
    %44 = tpu.matmul %42, %43, %cst_22 {dimension_numbers = #tpu.dot_dimension_numbers<[1], [0], [0], [1], [0, 0, 1, 1], [], []>} : vector<8x128xbf16>, vector<128x128xbf16>, vector<8x128xf32> -> vector<8x128xf32>
    %45 = vector.broadcast %4 : vector<1x128xf32> to vector<8x128xf32>
    %46 = arith.addf %44, %45 : vector<8x128xf32>
    %cst_23 = arith.constant 5.000000e-01 : f32
    %47 = vector.broadcast %cst_23 : f32 to vector<8x128xf32>
    %48 = arith.mulf %47, %46 : vector<8x128xf32>
    %49 = math.tanh %48 : vector<8x128xf32>
    %cst_24 = arith.constant 5.000000e-01 : f32
    %50 = vector.broadcast %cst_24 : f32 to vector<8x128xf32>
    %51 = arith.mulf %50, %49 : vector<8x128xf32>
    %cst_25 = arith.constant 5.000000e-01 : f32
    %52 = vector.broadcast %cst_25 : f32 to vector<8x128xf32>
    %53 = arith.addf %51, %52 : vector<8x128xf32>
    %c0_26 = arith.constant 0 : index
    %c0_27 = arith.constant 0 : index
    %54 = vector.load %arg5[%c0_26, %c0_27] : memref<8x128xf32, #tpu.memory_space<vmem>>, vector<8x128xf32>
    tpu.vector_store %arg5[%c0_26, %c0_27], %53 {strides = array<i32>} : memref<8x128xf32, #tpu.memory_space<vmem>>, vector<8x128xf32>,
    return
  }
}

</mosaic_0001>

<llo_original>
// kernel: mlp_ebm_forward.1
$region0: #{mlp_ebm_forward.1}
  #allocation0 [shape = 'u32[]', space=smem, size = 0x4, offset = 0x4, fixed_abs, tag = 'smem constant byte address 0x4 - core index']
  #allocation1 [shape = 'u32[144,128]{1,0:T(1,128)}', space=vmem, size = 0x12000, scoped, tag = 'internal scratch']
  %s0 = inlined_call_operand.vmem [shape: bf16[8,16], index: 0, kind: input, shape index: {}]
  %s1 = inlined_call_operand.vmem [shape: bf16[16,128], index: 1, kind: input, shape index: {}]
  %s2 = inlined_call_operand.vmem [shape: bf16[128,128], index: 2, kind: input, shape index: {}]
  %s3 = inlined_call_operand.vmem [shape: bf16[128,128], index: 3, kind: input, shape index: {}]
  %s4 = inlined_call_operand.vmem [shape: f32[8,128], index: 4, kind: input, shape index: {}]
  %s5 = inlined_call_operand.vmem [shape: f32[8,128], index: 5, kind: output, shape index: {}]
  %s6 = sld [smem:[#allocation0]]
  $region30: #{mlp_ebm_forward.1} parent=0
    _
  %s8 = ssub.s32 1, %s6
  %s9 = scalar_select 0, %s8, %s6
  // Predicated region
  $region2: #{mlp_ebm_forward.1} parent=0 // pred_check
    _
  $region3: #{mlp_ebm_forward.1} parent=0 // pred_check_branch
    %11 = sbr.rel (0) target = $region5
  $region4: #{mlp_ebm_forward.1} parent=0 // pred_region
    _
  $region5: #{mlp_ebm_forward.1} parent=0 // pred_fallthru
    _
  // Predicated region
  $region6: #{mlp_ebm_forward.1} parent=0 // pred_check
    _
  $region7: #{mlp_ebm_forward.1} parent=0 // pred_check_branch
    %13 = sbr.rel (0) target = $region9
  $region8: #{mlp_ebm_forward.1} parent=0 // pred_region
    _
  $region9: #{mlp_ebm_forward.1} parent=0 // pred_fallthru
    _
  // Predicated region
  $region10: #{mlp_ebm_forward.1} parent=0 // pred_check
    _
  $region11: #{mlp_ebm_forward.1} parent=0 // pred_check_branch
    %15 = sbr.rel (0) target = $region13
  $region12: #{mlp_ebm_forward.1} parent=0 // pred_region
    _
  $region13: #{mlp_ebm_forward.1} parent=0 // pred_fallthru
    _
  // Predicated region
  $region14: #{mlp_ebm_forward.1} parent=0 // pred_check
    _
  $region15: #{mlp_ebm_forward.1} parent=0 // pred_check_branch
    %17 = sbr.rel (0) target = $region17
  $region16: #{mlp_ebm_forward.1} parent=0 // pred_region
    _
  $region17: #{mlp_ebm_forward.1} parent=0 // pred_fallthru
    _
  // Predicated region
  $region18: #{mlp_ebm_forward.1} parent=0 // pred_check
    _
  $region19: #{mlp_ebm_forward.1} parent=0 // pred_check_branch
    %19 = sbr.rel (0) target = $region21
  $region20: #{mlp_ebm_forward.1} parent=0 // pred_region
    _
  $region21: #{mlp_ebm_forward.1} parent=0 // pred_fallthru
    _
  %v21 = vld [vmem:[%s4] sm:$0x1]
  %v22 = vld [vmem:[%s4 + $0x1] sm:$0x1]
  %v23 = vld [vmem:[%s4 + $0x2] sm:$0x1]
  %v24 = vld [vmem:[%s4 + $0x3] sm:$0x1]
  %v25 = vld [vmem:[%s4 + $0x4] sm:$0x1]
  %v26 = vld [vmem:[%s0] sm:$0xf]
  %v27 = vld [vmem:[%s1] sm:$0xf]
  %v28 = vld [vmem:[%s1 + $0x4] sm:$0xf]
  %v29 = vlaneseq
  %v30 = vshrl.u32 %v29, 7
  %v31 = vsub.s32 0, %v30
  %v32 = vrot.slane %v21, %v31
  %v35 = vunpack.c.l.b16 %v27
  %v36 = vunpack.c.l.b16 %v28
  %v37 = vpack.c.b16 %v36, %v35
  %vm39 = vcmask 130048
  %v41 = vsel %vm39, %v26, 0
  %43 = vmatprep.subr.bf16.mxu0 0
  %44 = vmatpush1.bf16.msra.mxu0 0
  %45 = vmatprep.subr.bf16.mxu0 0
  %46 = vmatpush1.bf16.msra.mxu0 0
  %47 = vmatprep.subr.bf16.mxu0 0
  %48 = vmatpush1.bf16.msra.mxu0 0
  %49 = vmatprep.subr.bf16.mxu0 0
  %50 = vmatpush1.bf16.msra.mxu0 0
  %51 = vmatprep.subr.bf16.mxu0 0
  %52 = vmatpush1.bf16.msra.mxu0 0
  %53 = vmatprep.subr.bf16.mxu0 0
  %54 = vmatpush1.bf16.msra.mxu0 0
  %55 = vmatprep.subr.bf16.mxu0 0
  %56 = vmatpush1.bf16.msra.mxu0 0
  %57 = vmatprep.subr.bf16.mxu0 0
  %58 = vmatpush1.bf16.msra.mxu0 %v37
  %59 = vmatprep.subr.bf16.mxu0 0
  %60 = vmatpush2.bf16.msra.mxu0 0
  %61 = vmatprep.subr.bf16.mxu0 0
  %62 = vmatpush2.bf16.msra.mxu0 0
  %63 = vmatprep.subr.bf16.mxu0 0
  %64 = vmatpush2.bf16.msra.mxu0 0
  %65 = vmatprep.subr.bf16.mxu0 0
  %66 = vmatpush2.bf16.msra.mxu0 0
  %67 = vmatprep.subr.bf16.mxu0 0
  %68 = vmatpush2.bf16.msra.mxu0 0
  %69 = vmatprep.subr.bf16.mxu0 0
  %70 = vmatpush2.bf16.msra.mxu0 0
  %71 = vmatprep.subr.bf16.mxu0 0
  %72 = vmatpush2.bf16.msra.mxu0 0
  %73 = vmatprep.subr.bf16.mxu0 0
  %74 = vmatpush2.bf16.msra.mxu0 0
  %75 = vmatprep.mubr.bf16.mxu0 0
  %76 = vmatmul.mubr.bf16.gmra.mxu0 %v41
  %v77 = vpop.f32.mrf.mxu0
  %v78 = vadd.f32 %v32, %v77
  %v79 = vpop.f32.mrf.mxu0
  %v80 = vpop.f32.mrf.mxu0
  %v81 = vpop.f32.mrf.mxu0
  %82 = vdwg.mxu0
  %v83 = vrot.slane %v78, 4
  %v84 = vadd.f32 %v78, %v83
  %v85 = vrot.slane %v84, 2
  %v86 = vadd.f32 %v84, %v85
  %v87 = vrot.slane %v86, 1
  %v88 = vadd.f32 %v86, %v87
  %v89 = vmul.f32 %v78, %v78
  %v90 = vrot.slane %v89, 4
  %v91 = vadd.f32 %v89, %v90
  %v92 = vrot.slane %v91, 2
  %v93 = vadd.f32 %v91, %v92
  %v94 = vrot.slane %v93, 1
  %v95 = vadd.f32 %v93, %v94
  %v96 = vmul.f32 %v88, 0.125
  %v97 = vmul.f32 %v95, 0.125
  %v98 = vmul.f32 %v96, %v96
  %v99 = vsub.f32 %v97, %v98
  %v100 = vmax.f32 %v99, 0.0
  %v101 = vadd.f32 %v100, 1e-05
  %v102 = vrsqrt.pop %v101
  %v103 = vmul.f32 %v22, %v102
  %v104 = vsub.f32 %v78, %v96
  %v105 = vlaneseq
  %v106 = vshrl.u32 %v105, 7
  %v107 = vsub.s32 0, %v106
  %v108 = vrot.slane %v103, %v107
  %v109 = vmul.f32 %v104, %v108
  %v110 = vlaneseq
  %v111 = vshrl.u32 %v110, 7
  %v112 = vsub.s32 0, %v111
  %v113 = vrot.slane %v23, %v112
  %v114 = vadd.f32 %v109, %v113
  %v115 = vmax.f32 %v114, 0.0
  %v116 = vpack.c.bf16 %v115, %v115
  %v117 = vld [vmem:[%s2] sm:$0xf]
  %v118 = vld [vmem:[%s2 + $0x4] sm:$0xf]
  %v119 = vld [vmem:[%s2 + $0x8] sm:$0xf]
  %v120 = vld [vmem:[%s2 + $0xc] sm:$0xf]
  %v121 = vld [vmem:[%s2 + $0x10] sm:$0xf]
  %v122 = vld [vmem:[%s2 + $0x14] sm:$0xf]
  %v123 = vld [vmem:[%s2 + $0x18] sm:$0xf]
  %v124 = vld [vmem:[%s2 + $0x1c] sm:$0xf]
  %v125 = vld [vmem:[%s2 + $0x20] sm:$0xf]
  %v126 = vld [vmem:[%s2 + $0x24] sm:$0xf]
  %v127 = vld [vmem:[%s2 + $0x28] sm:$0xf]
  %v128 = vld [vmem:[%s2 + $0x2c] sm:$0xf]
  %v129 = vld [vmem:[%s2 + $0x30] sm:$0xf]
  %v130 = vld [vmem:[%s2 + $0x34] sm:$0xf]
  %v131 = vld [vmem:[%s2 + $0x38] sm:$0xf]
  %v132 = vld [vmem:[%s2 + $0x3c] sm:$0xf]
  %v133 = vlaneseq
  %v134 = vshrl.u32 %v133, 7
  %v135 = vsub.s32 0, %v134
  %v136 = vrot.slane %v24, %v135
  %v153 = vunpack.c.l.b16 %v117
  %v154 = vunpack.c.l.b16 %v118
  %v155 = vunpack.c.l.b16 %v119
  %v156 = vunpack.c.l.b16 %v120
  %v157 = vunpack.c.l.b16 %v121
  %v158 = vunpack.c.l.b16 %v122
  %v159 = vunpack.c.l.b16 %v123
  %v160 = vunpack.c.l.b16 %v124
  %v161 = vunpack.c.l.b16 %v125
  %v162 = vunpack.c.l.b16 %v126
  %v163 = vunpack.c.l.b16 %v127
  %v164 = vunpack.c.l.b16 %v128
  %v165 = vunpack.c.l.b16 %v129
  %v166 = vunpack.c.l.b16 %v130
  %v167 = vunpack.c.l.b16 %v131
  %v168 = vunpack.c.l.b16 %v132
  %v169 = vpack.c.b16 %v154, %v153
  %v170 = vpack.c.b16 %v156, %v155
  %v171 = vpack.c.b16 %v158, %v157
  %v172 = vpack.c.b16 %v160, %v159
  %v173 = vpack.c.b16 %v162, %v161
  %v174 = vpack.c.b16 %v164, %v163
  %v175 = vpack.c.b16 %v166, %v165
  %v176 = vpack.c.b16 %v168, %v167
  %185 = vmatprep.subr.bf16.mxu0 0
  %186 = vmatpush1.bf16.msra.mxu0 %v176
  %187 = vmatprep.subr.bf16.mxu0 0
  %188 = vmatpush1.bf16.msra.mxu0 %v175
  %189 = vmatprep.subr.bf16.mxu0 0
  %190 = vmatpush1.bf16.msra.mxu0 %v174
  %191 = vmatprep.subr.bf16.mxu0 0
  %192 = vmatpush1.bf16.msra.mxu0 %v173
  %193 = vmatprep.subr.bf16.mxu0 0
  %194 = vmatpush1.bf16.msra.mxu0 %v172
  %195 = vmatprep.subr.bf16.mxu0 0
  %196 = vmatpush1.bf16.msra.mxu0 %v171
  %197 = vmatprep.subr.bf16.mxu0 0
  %198 = vmatpush1.bf16.msra.mxu0 %v170
  %199 = vmatprep.subr.bf16.mxu0 0
  %200 = vmatpush1.bf16.msra.mxu0 %v169
  %201 = vmatprep.subr.bf16.mxu0 0
  %202 = vmatpush2.bf16.msra.mxu0 0
  %203 = vmatprep.subr.bf16.mxu0 0
  %204 = vmatpush2.bf16.msra.mxu0 0
  %205 = vmatprep.subr.bf16.mxu0 0
  %206 = vmatpush2.bf16.msra.mxu0 0
  %207 = vmatprep.subr.bf16.mxu0 0
  %208 = vmatpush2.bf16.msra.mxu0 0
  %209 = vmatprep.subr.bf16.mxu0 0
  %210 = vmatpush2.bf16.msra.mxu0 0
  %211 = vmatprep.subr.bf16.mxu0 0
  %212 = vmatpush2.bf16.msra.mxu0 0
  %213 = vmatprep.subr.bf16.mxu0 0
  %214 = vmatpush2.bf16.msra.mxu0 0
  %215 = vmatprep.subr.bf16.mxu0 0
  %216 = vmatpush2.bf16.msra.mxu0 0
  %217 = vmatprep.mubr.bf16.mxu0 0
  %218 = vmatmul.mubr.bf16.gmra.mxu0 %v116
  %v219 = vpop.f32.mrf.mxu0
  %v220 = vadd.f32 %v136, %v219
  %v221 = vpop.f32.mrf.mxu0
  %v222 = vpop.f32.mrf.mxu0
  %v223 = vpop.f32.mrf.mxu0
  %224 = vdwg.mxu0
  %v225 = vmax.f32 %v220, 0.0
  %v226 = vpack.c.bf16 %v225, %v225
  %v227 = vld [vmem:[%s3] sm:$0xf]
  %v228 = vld [vmem:[%s3 + $0x4] sm:$0xf]
  %v229 = vld [vmem:[%s3 + $0x8] sm:$0xf]
  %v230 = vld [vmem:[%s3 + $0xc] sm:$0xf]
  %v231 = vld [vmem:[%s3 + $0x10] sm:$0xf]
  %v232 = vld [vmem:[%s3 + $0x14] sm:$0xf]
  %v233 = vld [vmem:[%s3 + $0x18] sm:$0xf]
  %v234 = vld [vmem:[%s3 + $0x1c] sm:$0xf]
  %v235 = vld [vmem:[%s3 + $0x20] sm:$0xf]
  %v236 = vld [vmem:[%s3 + $0x24] sm:$0xf]
  %v237 = vld [vmem:[%s3 + $0x28] sm:$0xf]
  %v238 = vld [vmem:[%s3 + $0x2c] sm:$0xf]
  %v239 = vld [vmem:[%s3 + $0x30] sm:$0xf]
  %v240 = vld [vmem:[%s3 + $0x34] sm:$0xf]
  %v241 = vld [vmem:[%s3 + $0x38] sm:$0xf]
  %v242 = vld [vmem:[%s3 + $0x3c] sm:$0xf]
  %v243 = vlaneseq
  %v244 = vshrl.u32 %v243, 7
  %v245 = vsub.s32 0, %v244
  %v246 = vrot.slane %v25, %v245
  %v263 = vunpack.c.l.b16 %v227
  %v264 = vunpack.c.l.b16 %v228
  %v265 = vunpack.c.l.b16 %v229
  %v266 = vunpack.c.l.b16 %v230
  %v267 = vunpack.c.l.b16 %v231
  %v268 = vunpack.c.l.b16 %v232
  %v269 = vunpack.c.l.b16 %v233
  %v270 = vunpack.c.l.b16 %v234
  %v271 = vunpack.c.l.b16 %v235
  %v272 = vunpack.c.l.b16 %v236
  %v273 = vunpack.c.l.b16 %v237
  %v274 = vunpack.c.l.b16 %v238
  %v275 = vunpack.c.l.b16 %v239
  %v276 = vunpack.c.l.b16 %v240
  %v277 = vunpack.c.l.b16 %v241
  %v278 = vunpack.c.l.b16 %v242
  %v279 = vpack.c.b16 %v264, %v263
  %v280 = vpack.c.b16 %v266, %v265
  %v281 = vpack.c.b16 %v268, %v267
  %v282 = vpack.c.b16 %v270, %v269
  %v283 = vpack.c.b16 %v272, %v271
  %v284 = vpack.c.b16 %v274, %v273
  %v285 = vpack.c.b16 %v276, %v275
  %v286 = vpack.c.b16 %v278, %v277
  %295 = vmatprep.subr.bf16.mxu0 0
  %296 = vmatpush1.bf16.msra.mxu0 %v286
  %297 = vmatprep.subr.bf16.mxu0 0
  %298 = vmatpush1.bf16.msra.mxu0 %v285
  %299 = vmatprep.subr.bf16.mxu0 0
  %300 = vmatpush1.bf16.msra.mxu0 %v284
  %301 = vmatprep.subr.bf16.mxu0 0
  %302 = vmatpush1.bf16.msra.mxu0 %v283
  %303 = vmatprep.subr.bf16.mxu0 0
  %304 = vmatpush1.bf16.msra.mxu0 %v282
  %305 = vmatprep.subr.bf16.mxu0 0
  %306 = vmatpush1.bf16.msra.mxu0 %v281
  %307 = vmatprep.subr.bf16.mxu0 0
  %308 = vmatpush1.bf16.msra.mxu0 %v280
  %309 = vmatprep.subr.bf16.mxu0 0
  %310 = vmatpush1.bf16.msra.mxu0 %v279
  %311 = vmatprep.subr.bf16.mxu0 0
  %312 = vmatpush2.bf16.msra.mxu0 0
  %313 = vmatprep.subr.bf16.mxu0 0
  %314 = vmatpush2.bf16.msra.mxu0 0
  %315 = vmatprep.subr.bf16.mxu0 0
  %316 = vmatpush2.bf16.msra.mxu0 0
  %317 = vmatprep.subr.bf16.mxu0 0
  %318 = vmatpush2.bf16.msra.mxu0 0
  %319 = vmatprep.subr.bf16.mxu0 0
  %320 = vmatpush2.bf16.msra.mxu0 0
  %321 = vmatprep.subr.bf16.mxu0 0
  %322 = vmatpush2.bf16.msra.mxu0 0
  %323 = vmatprep.subr.bf16.mxu0 0
  %324 = vmatpush2.bf16.msra.mxu0 0
  %325 = vmatprep.subr.bf16.mxu0 0
  %326 = vmatpush2.bf16.msra.mxu0 0
  %327 = vmatprep.mubr.bf16.mxu0 0
  %328 = vmatmul.mubr.bf16.gmra.mxu0 %v226
  %v329 = vpop.f32.mrf.mxu0
  %v330 = vadd.f32 %v246, %v329
  %v331 = vpop.f32.mrf.mxu0
  %v332 = vpop.f32.mrf.mxu0
  %v333 = vpop.f32.mrf.mxu0
  %334 = vdwg.mxu0
  %v335 = vmul.f32 %v330, 0.5
  %v336 = vtanh.pop %v335
  %v337 = vmul.f32 %v336, 0.5
  %v338 = vadd.f32 %v337, 0.5
  %339 = vst [vmem:[%s5] sm:$0xff] %v338
  // Predicated region
  $region22: #{mlp_ebm_forward.1} parent=0 // pred_check
    _
  $region23: #{mlp_ebm_forward.1} parent=0 // pred_check_branch
    %341 = sbr.rel (0) target = $region25
  $region24: #{mlp_ebm_forward.1} parent=0 // pred_region
    _
  $region25: #{mlp_ebm_forward.1} parent=0 // pred_fallthru
    _
  // Predicated region
  $region26: #{mlp_ebm_forward.1} parent=0 // pred_check
    _
  $region27: #{mlp_ebm_forward.1} parent=0 // pred_check_branch
    %343 = sbr.rel (0) target = $region29
  $region28: #{mlp_ebm_forward.1} parent=0 // pred_region
    _
  $region29: #{mlp_ebm_forward.1} parent=0 // pred_fallthru
    _

</llo_original>
